<compile_context>
chip_gen: v7x
topology: tpu7x:2x2x1
jax: 0.10.0
libtpu: 0.0.40
codegen_flags: <defaults>
</compile_context>

<pallas_src>
import jax
import jax.numpy as jnp
from jax.experimental import pallas as pl
from jax.experimental.pallas import tpu as pltpu


def safety_critic_kernel(state_ref, action_ref, w1s_ref, w1a_ref, b1_ref,
                         w2_ref, b2_ref, w3_ref, b3_ref, out_ref):
    mm_dtype = w1s_ref.dtype          # f32, or bf16 if the wrapper cast the weights
    s = state_ref[...].astype(mm_dtype)
    a = action_ref[...].astype(mm_dtype)

    # fi = relu(cat(s, a) @ W1 + b1)   (concat folded into two matmuls)
    h1 = jnp.dot(s, w1s_ref[...], preferred_element_type=jnp.float32)
    h1 = h1 + jnp.dot(a, w1a_ref[...], preferred_element_type=jnp.float32)
    h1 = jnp.maximum(h1 + b1_ref[...], 0.0)                     # f32 bias/ReLU

    # fi = relu(fi @ W2 + b2)
    h2 = jnp.dot(h1.astype(mm_dtype), w2_ref[...],
                 preferred_element_type=jnp.float32)
    h2 = jnp.maximum(h2 + b2_ref[...], 0.0)

    # fi = fi @ W3 + b3 with N=1 -> VPU multiply + cross-lane (XLU) reduction.
    h3 = jnp.sum(h2 * w3_ref[...], axis=-1, keepdims=True)
    out_ref[...] = (h3 + b3_ref[0, 0]).astype(out_ref.dtype)


def safety_critic_forward(state, action, params, *, block_b=1024, matmul_dtype=None):
    """state: (B, state_dim), action: (B, action_dim) -> (B, 1) float32."""
    w1, b1, w2, b2, w3, b3 = params
    B, state_dim = state.shape
    action_dim = action.shape[1]
    net_width = w1.shape[1]

    # Split W1 so the state/action concat never materializes in HBM.
    w1_s = w1[:state_dim]                       # (state_dim, W)
    w1_a = w1[state_dim:]                       # (action_dim, W)
    w3_row = w3.reshape(1, net_width)           # (W, 1) -> (1, W) for the VPU reduce
    b3_s = b3.reshape(1, 1)                     # scalar bias -> SMEM

    if matmul_dtype is not None:                # bandwidth option (e.g. bf16 on v6e/v7x)
        w1_s = w1_s.astype(matmul_dtype)
        w1_a = w1_a.astype(matmul_dtype)
        w2 = w2.astype(matmul_dtype)

    # Batch tile: whole batch if small, otherwise `block_b` rows rounded down to a
    # multiple of 8 (sublane constraint).  Partial last tile handled by cdiv +
    # masked writeback (rows are independent, so padding rows are harmless).
    if B <= block_b:
        tile_b = B
    else:
        tile_b = max(8, (block_b // 8) * 8)
    grid = (pl.cdiv(B, tile_b),)

    row = lambda i: (i, 0)      # activation / output tiles march over the batch
    const = lambda i: (0, 0)    # weights & biases: same block every step -> VMEM-resident

    in_specs = [
        pl.BlockSpec((tile_b, state_dim), row),
        pl.BlockSpec((tile_b, action_dim), row),
        pl.BlockSpec((state_dim, net_width), const),
        pl.BlockSpec((action_dim, net_width), const),
        pl.BlockSpec((1, net_width), const),
        pl.BlockSpec((net_width, net_width), const),
        pl.BlockSpec((1, net_width), const),
        pl.BlockSpec((1, net_width), const),
        pl.BlockSpec(memory_space=pltpu.MemorySpace.SMEM),   # b3 (1,1) scalar
    ]
    out_specs = pl.BlockSpec((tile_b, 1), row)

    # Advisory cost estimate so XLA schedules the custom call sensibly in a larger jit.
    k1 = state_dim + action_dim
    flops = 2 * B * (k1 * net_width + net_width * net_width + net_width)
    weight_bytes = sum(int(x.size) * x.dtype.itemsize
                       for x in (w1_s, w1_a, b1, w2, b2, w3_row, b3_s))
    bytes_accessed = 4 * B * (k1 + 1) + weight_bytes

    return pl.pallas_call(
        safety_critic_kernel,
        out_shape=jax.ShapeDtypeStruct((B, 1), jnp.float32),
        grid_spec=pl.GridSpec(grid=grid, in_specs=in_specs, out_specs=out_specs),
        compiler_params=pltpu.CompilerParams(dimension_semantics=("parallel",)),
        cost_estimate=pl.CostEstimate(flops=flops, transcendentals=0,
                                      bytes_accessed=bytes_accessed),
    )(state, action, w1_s, w1_a, b1, w2, b2, w3_row, b3_s)


def init_params(key, state_dim, action_dim, net_width):
    """Deterministic PyTorch-style (uniform +/- 1/sqrt(fan_in)) init, stored (in, out)."""
    dims = [(state_dim + action_dim, net_width),
            (net_width, net_width),
            (net_width, 1)]
    params = []
    for (fan_in, fan_out) in dims:
        key, kw, kb = jax.random.split(key, 3)
        bound = 1.0 / jnp.sqrt(fan_in)
        w = jax.random.uniform(kw, (fan_in, fan_out), jnp.float32, -bound, bound)
        b = jax.random.uniform(kb, (1, fan_out), jnp.float32, -bound, bound)
        params += [w, b]
    return tuple(params)


if __name__ == "__main__":
    state_dim, action_dim, net_width, batch = 16, 8, 32, 64

    key = jax.random.PRNGKey(0)
    k_state, k_action, k_params = jax.random.split(key, 3)

    state = jax.random.normal(k_state, (batch, state_dim), jnp.float32)
    action = jax.random.normal(k_action, (batch, action_dim), jnp.float32)
    params = init_params(k_params, state_dim, action_dim, net_width)

    # f32 path with a small 16-row batch tile so the grid has several pipelined steps.
    out = safety_critic_forward(state, action, params, block_b=16)
    jax.block_until_ready(out)

    # Pure-JAX reference.
    w1, b1, w2, b2, w3, b3 = params
    sa = jnp.concatenate([state, action], axis=1)
    ref = jnp.maximum(sa @ w1 + b1, 0.0)
    ref = jnp.maximum(ref @ w2 + b2, 0.0)
    ref = ref @ w3 + b3
    assert out.shape == (batch, 1)
    assert jnp.allclose(out, ref, atol=1e-5, rtol=1e-5)

    # Single-tile path (whole batch in one grid step, the common small-batch RL case).
    out_single = safety_critic_forward(state, action, params)
    jax.block_until_ready(out_single)
    assert jnp.allclose(out_single, ref, atol=1e-5, rtol=1e-5)

    # bf16-matmul-operand path (f32 accumulate / f32 elementwise) — bandwidth option.
    out_bf16 = safety_critic_forward(state, action, params, block_b=16,
                                     matmul_dtype=jnp.bfloat16)
    jax.block_until_ready(out_bf16)
    assert jnp.allclose(out_bf16, ref, atol=5e-2, rtol=5e-2)

    print("KERNEL_OK")
</pallas_src>

<mosaic_0001>
module attributes {stable_mosaic.version = 11 : i64} {
  func.func @safety_critic_kernel(%arg0: i32, %arg1: memref<16x16xf32, #tpu.memory_space<vmem>>, %arg2: memref<16x8xf32, #tpu.memory_space<vmem>>, %arg3: memref<16x32xf32, #tpu.memory_space<vmem>>, %arg4: memref<8x32xf32, #tpu.memory_space<vmem>>, %arg5: memref<1x32xf32, #tpu.memory_space<vmem>>, %arg6: memref<32x32xf32, #tpu.memory_space<vmem>>, %arg7: memref<1x32xf32, #tpu.memory_space<vmem>>, %arg8: memref<1x32xf32, #tpu.memory_space<vmem>>, %arg9: memref<1x1xf32, #tpu.memory_space<smem>>, %arg10: memref<16x1xf32, #tpu.memory_space<vmem>>) attributes {dimension_semantics = [#tpu.dimension_semantics<parallel>], iteration_bounds = array<i64: 4>, scalar_prefetch = 0 : i64, scratch_operands = 0 : i64, tpu.core_type = #tpu.core_type<tc>, window_params = [{transform_indices = @transform_0, window_bounds = array<i64: 16, 16>}, {transform_indices = @transform_1, window_bounds = array<i64: 16, 8>}, {pipeline_mode = #tpu.pipeline_mode<synchronous>, transform_indices = @transform_2, window_bounds = array<i64: 16, 32>}, {pipeline_mode = #tpu.pipeline_mode<synchronous>, transform_indices = @transform_3, window_bounds = array<i64: 8, 32>}, {pipeline_mode = #tpu.pipeline_mode<synchronous>, transform_indices = @transform_4, window_bounds = array<i64: 1, 32>}, {pipeline_mode = #tpu.pipeline_mode<synchronous>, transform_indices = @transform_5, window_bounds = array<i64: 32, 32>}, {pipeline_mode = #tpu.pipeline_mode<synchronous>, transform_indices = @transform_6, window_bounds = array<i64: 1, 32>}, {pipeline_mode = #tpu.pipeline_mode<synchronous>, transform_indices = @transform_7, window_bounds = array<i64: 1, 32>}, {transform_indices = @transform_8, window_bounds = array<i64: 1, 1>}, {transform_indices = @transform_9, window_bounds = array<i64: 16, 1>}]} {
    %c0 = arith.constant 0 : index
    %c0_0 = arith.constant 0 : index
    %0 = vector.load %arg1[%c0, %c0_0] : memref<16x16xf32, #tpu.memory_space<vmem>>, vector<16x16xf32>
    %c0_1 = arith.constant 0 : index
    %c0_2 = arith.constant 0 : index
    %1 = vector.load %arg2[%c0_1, %c0_2] : memref<16x8xf32, #tpu.memory_space<vmem>>, vector<16x8xf32>
    %c0_3 = arith.constant 0 : index
    %c0_4 = arith.constant 0 : index
    %2 = vector.load %arg3[%c0_3, %c0_4] : memref<16x32xf32, #tpu.memory_space<vmem>>, vector<16x32xf32>
    %cst = arith.constant dense<0.000000e+00> : vector<16x32xf32>
    %3 = tpu.matmul %0, %2, %cst {dimension_numbers = #tpu.dot_dimension_numbers<[1], [0], [0], [1], [0, 0, 1, 1], [], []>} : vector<16x16xf32>, vector<16x32xf32>, vector<16x32xf32> -> vector<16x32xf32>
    %c0_5 = arith.constant 0 : index
    %c0_6 = arith.constant 0 : index
    %4 = vector.load %arg4[%c0_5, %c0_6] : memref<8x32xf32, #tpu.memory_space<vmem>>, vector<8x32xf32>
    %cst_7 = arith.constant dense<0.000000e+00> : vector<16x32xf32>
    %5 = tpu.matmul %1, %4, %cst_7 {dimension_numbers = #tpu.dot_dimension_numbers<[1], [0], [0], [1], [0, 0, 1, 1], [], []>} : vector<16x8xf32>, vector<8x32xf32>, vector<16x32xf32> -> vector<16x32xf32>
    %6 = arith.addf %3, %5 : vector<16x32xf32>
    %c0_8 = arith.constant 0 : index
    %c0_9 = arith.constant 0 : index
    %7 = vector.load %arg5[%c0_8, %c0_9] : memref<1x32xf32, #tpu.memory_space<vmem>>, vector<1x32xf32>
    %8 = vector.broadcast %7 : vector<1x32xf32> to vector<16x32xf32>
    %9 = arith.addf %6, %8 : vector<16x32xf32>
    %cst_10 = arith.constant 0.000000e+00 : f32
    %10 = vector.broadcast %cst_10 : f32 to vector<16x32xf32>
    %11 = arith.maximumf %9, %10 : vector<16x32xf32>
    %c0_11 = arith.constant 0 : index
    %c0_12 = arith.constant 0 : index
    %12 = vector.load %arg6[%c0_11, %c0_12] : memref<32x32xf32, #tpu.memory_space<vmem>>, vector<32x32xf32>
    %cst_13 = arith.constant dense<0.000000e+00> : vector<16x32xf32>
    %13 = tpu.matmul %11, %12, %cst_13 {dimension_numbers = #tpu.dot_dimension_numbers<[1], [0], [0], [1], [0, 0, 1, 1], [], []>} : vector<16x32xf32>, vector<32x32xf32>, vector<16x32xf32> -> vector<16x32xf32>
    %c0_14 = arith.constant 0 : index
    %c0_15 = arith.constant 0 : index
    %14 = vector.load %arg7[%c0_14, %c0_15] : memref<1x32xf32, #tpu.memory_space<vmem>>, vector<1x32xf32>
    %15 = vector.broadcast %14 : vector<1x32xf32> to vector<16x32xf32>
    %16 = arith.addf %13, %15 : vector<16x32xf32>
    %cst_16 = arith.constant 0.000000e+00 : f32
    %17 = vector.broadcast %cst_16 : f32 to vector<16x32xf32>
    %18 = arith.maximumf %16, %17 : vector<16x32xf32>
    %c0_17 = arith.constant 0 : index
    %c0_18 = arith.constant 0 : index
    %19 = vector.load %arg8[%c0_17, %c0_18] : memref<1x32xf32, #tpu.memory_space<vmem>>, vector<1x32xf32>
    %20 = vector.broadcast %19 : vector<1x32xf32> to vector<16x32xf32>
    %21 = arith.mulf %18, %20 : vector<16x32xf32>
    %cst_19 = arith.constant dense<0.000000e+00> : vector<16xf32>
    %22 = vector.multi_reduction <add>, %21, %cst_19 [1] : vector<16x32xf32> to vector<16xf32>
    %23 = vector.shape_cast %22 : vector<16xf32> to vector<16x1xf32>
    %c0_20 = arith.constant 0 : index
    %c0_21 = arith.constant 0 : index
    %24 = memref.load %arg9[%c0_20, %c0_21] : memref<1x1xf32, #tpu.memory_space<smem>>
    %25 = vector.broadcast %24 : f32 to vector<16x1xf32>
    %26 = arith.addf %23, %25 : vector<16x1xf32>
    %c0_22 = arith.constant 0 : index
    %c0_23 = arith.constant 0 : index
    %27 = vector.load %arg10[%c0_22, %c0_23] : memref<16x1xf32, #tpu.memory_space<vmem>>, vector<16x1xf32>
    tpu.vector_store %arg10[%c0_22, %c0_23], %26 {strides = array<i32>} : memref<16x1xf32, #tpu.memory_space<vmem>>, vector<16x1xf32>,
    return
  }
  func.func @transform_0(%arg0: i32) -> (i32, i32) {
    %c0_i32 = arith.constant 0 : i32
    %c0_i32_0 = arith.constant 0 : i32
    return %arg0, %c0_i32 : i32, i32
  }
  func.func @transform_1(%arg0: i32) -> (i32, i32) {
    %c0_i32 = arith.constant 0 : i32
    %c0_i32_0 = arith.constant 0 : i32
    return %arg0, %c0_i32 : i32, i32
  }
  func.func @transform_2(%arg0: i32) -> (i32, i32) {
    %c0_i32 = arith.constant 0 : i32
    %c0_i32_0 = arith.constant 0 : i32
    %c0_i32_1 = arith.constant 0 : i32
    return %c0_i32, %c0_i32_0 : i32, i32
  }
  func.func @transform_3(%arg0: i32) -> (i32, i32) {
    %c0_i32 = arith.constant 0 : i32
    %c0_i32_0 = arith.constant 0 : i32
    %c0_i32_1 = arith.constant 0 : i32
    return %c0_i32, %c0_i32_0 : i32, i32
  }
  func.func @transform_4(%arg0: i32) -> (i32, i32) {
    %c0_i32 = arith.constant 0 : i32
    %c0_i32_0 = arith.constant 0 : i32
    %c0_i32_1 = arith.constant 0 : i32
    return %c0_i32, %c0_i32_0 : i32, i32
  }
  func.func @transform_5(%arg0: i32) -> (i32, i32) {
    %c0_i32 = arith.constant 0 : i32
    %c0_i32_0 = arith.constant 0 : i32
    %c0_i32_1 = arith.constant 0 : i32
    return %c0_i32, %c0_i32_0 : i32, i32
  }
  func.func @transform_6(%arg0: i32) -> (i32, i32) {
    %c0_i32 = arith.constant 0 : i32
    %c0_i32_0 = arith.constant 0 : i32
    %c0_i32_1 = arith.constant 0 : i32
    return %c0_i32, %c0_i32_0 : i32, i32
  }
  func.func @transform_7(%arg0: i32) -> (i32, i32) {
    %c0_i32 = arith.constant 0 : i32
    %c0_i32_0 = arith.constant 0 : i32
    %c0_i32_1 = arith.constant 0 : i32
    return %c0_i32, %c0_i32_0 : i32, i32
  }
  func.func @transform_8(%arg0: i32) -> (i32, i32) {
    %c0_i32 = arith.constant 0 : i32
    %c0_i32_0 = arith.constant 0 : i32
    %c0_i32_1 = arith.constant 0 : i32
    return %c0_i32, %c0_i32_0 : i32, i32
  }
  func.func @transform_9(%arg0: i32) -> (i32, i32) {
    %c0_i32 = arith.constant 0 : i32
    %c0_i32_0 = arith.constant 0 : i32
    return %arg0, %c0_i32 : i32, i32
  }
}

</mosaic_0001>

<llo_original>
// kernel: tpu_custom_call.1
$region0: #{tpu_custom_call.1}
  #allocation0 [shape = 'u32[]', space=smem, size = 0x4, offset = 0x4, fixed_abs, tag = 'smem constant byte address 0x4 - core index']
  #allocation1 [shape = 'u32[144,128]{1,0:T(1,128)}', space=vmem, size = 0x12000, scoped, tag = 'internal scratch']
  #allocation2 [shape = 'f32[1,1]{1,0:T(1,128)S(6)}', space=smem, size = 0x200, scoped, tag = 'scoped memory for tpu_custom_call.1']
  %s0 = inlined_call_operand.vmem [shape: f32[64,16], index: 0, kind: input, shape index: {}]
  %s1 = inlined_call_operand.vmem [shape: f32[64,8], index: 1, kind: input, shape index: {}]
  %s2 = inlined_call_operand.vmem [shape: f32[16,32], index: 2, kind: input, shape index: {}]
  %s3 = inlined_call_operand.vmem [shape: f32[8,32], index: 3, kind: input, shape index: {}]
  %s4 = inlined_call_operand.vmem [shape: f32[1,32], index: 4, kind: input, shape index: {}]
  %s5 = inlined_call_operand.vmem [shape: f32[32,32], index: 5, kind: input, shape index: {}]
  %s6 = inlined_call_operand.vmem [shape: f32[1,32], index: 6, kind: input, shape index: {}]
  %s7 = inlined_call_operand.vmem [shape: f32[1,32], index: 7, kind: input, shape index: {}]
  %s8 = inlined_call_operand.<no memory space> [shape: f32[1,1], index: 8, kind: input, shape index: {}]
  %s9 = inlined_call_operand.vmem [shape: f32[64,1], index: 9, kind: output, shape index: {}]
  %s10 = sld [smem:[#allocation0]]
  $region69: #{tpu_custom_call.1} parent=0
    _
  %s12 = ssub.s32 1, %s10
  %s13 = scalar_select 0, %s12, %s10
  %14 = sst [smem:[#allocation2]] %s8
  loop: start=0, step=1, limit=6
  $region2: #{tpu_custom_call.1} parent=0 // loop_pre_header
    _
  $region3: #{tpu_custom_call.1} parent=0 // loop_header
    %s16 = sphi 0, %s20
    %p17 = scmp.ge.s32.totalorder %s16, 6
    %s26 = sphi 0, %s28
    %s29 = sphi 0, %s26
    %s30 = sphi 0, %s29
    %s46 = sphi 0, %s30
    %s52 = sphi 0, %s54
    %s55 = sphi 0, %s52
    %s56 = sphi 0, %s55
    %s72 = sphi 0, %s56
    %s76 = sphi 0, %s76
    %s78 = sphi 0, %s76
    %s79 = sphi 0, %s78
    %s93 = sphi 0, %s79
    %s97 = sphi 0, %s97
    %s99 = sphi 0, %s97
    %s100 = sphi 0, %s99
    %s114 = sphi 0, %s100
    %s118 = sphi 0, %s118
    %s120 = sphi 0, %s118
    %s121 = sphi 0, %s120
    %s135 = sphi 0, %s121
    %s139 = sphi 0, %s139
    %s141 = sphi 0, %s139
    %s142 = sphi 0, %s141
    %s156 = sphi 0, %s142
    %s160 = sphi 0, %s160
    %s162 = sphi 0, %s160
    %s163 = sphi 0, %s162
    %s177 = sphi 0, %s163
    %s181 = sphi 0, %s181
    %s183 = sphi 0, %s181
    %s184 = sphi 0, %s183
    %s198 = sphi 0, %s184
    %s202 = sphi 0, %s202
    %s204 = sphi 0, %s202
    %s205 = sphi 0, %s204
    %s219 = sphi 0, %s205
    %s225 = sphi 0, %s227
    %s228 = sphi 0, %s225
    %s229 = sphi 0, %s228
    %s245 = sphi 0, %s229
  $region4: #{tpu_custom_call.1} parent=0 // loop_header_branch
    %19 = sbr.rel (%p17) target = $region8
  $region5: #{tpu_custom_call.1} parent=0 // loop_body
    %s21 = ssub.s32 %s16, 1
    %s22 = ssub.s32 %s16, 2
    %s23 = sadd.s32 %s16, 1
    %s24 = ssub.s32 %s16, %s23
    %p25 = scmp.eq.s32.totalorder %s24, 0
    %s27 = sadd.s32 %s26, 1
    %s28 = scalar_select %p25, %s26, %s27
    %p31 = pneg %p25
    %p32 = scmp.eq.s32.totalorder %s16, 3
    %p33 = por %p31, %p32
    %p34 = scmp.ne.s32.totalorder %s26, %s29
    %p35 = scmp.eq.s32.totalorder %s16, 0
    %p36 = por %p34, %p35
    %p37 = scmp.ne.s32.totalorder %s26, %s29
    %p38 = scmp.eq.s32.totalorder %s21, 3
    %p39 = por %p37, %p38
    %p40 = scmp.ne.s32.totalorder %s29, %s30
    %p41 = scmp.eq.s32.totalorder %s21, 0
    %p42 = por %p40, %p41
    %p43 = scmp.ne.s32.totalorder %s29, %s30
    %p44 = scmp.eq.s32.totalorder %s22, 3
    %p45 = por %p43, %p44
    %p47 = scmp.ne.s32.totalorder %s30, %s46
    %p48 = scmp.eq.s32.totalorder %s22, 0
    %p49 = por %p47, %p48
    %s50 = ssub.s32 %s16, %s23
    %p51 = scmp.eq.s32.totalorder %s50, 0
    %s53 = sadd.s32 %s52, 1
    %s54 = scalar_select %p51, %s52, %s53
    %p57 = pneg %p51
    %p58 = scmp.eq.s32.totalorder %s16, 3
    %p59 = por %p57, %p58
    %p60 = scmp.ne.s32.totalorder %s52, %s55
    %p61 = scmp.eq.s32.totalorder %s16, 0
    %p62 = por %p60, %p61
    %p63 = scmp.ne.s32.totalorder %s52, %s55
    %p64 = scmp.eq.s32.totalorder %s21, 3
    %p65 = por %p63, %p64
    %p66 = scmp.ne.s32.totalorder %s55, %s56
    %p67 = scmp.eq.s32.totalorder %s21, 0
    %p68 = por %p66, %p67
    %p69 = scmp.ne.s32.totalorder %s55, %s56
    %p70 = scmp.eq.s32.totalorder %s22, 3
    %p71 = por %p69, %p70
    %p73 = scmp.ne.s32.totalorder %s56, %s72
    %p74 = scmp.eq.s32.totalorder %s22, 0
    %p75 = por %p73, %p74
    %s77 = sadd.s32 %s76, 1
    %p80 = scmp.eq.s32.totalorder %s16, 3
    %p81 = scmp.ne.s32.totalorder %s76, %s78
    %p82 = scmp.eq.s32.totalorder %s16, 0
    %p83 = por %p81, %p82
    %p84 = scmp.ne.s32.totalorder %s76, %s78
    %p85 = scmp.eq.s32.totalorder %s21, 3
    %p86 = por %p84, %p85
    %p87 = scmp.ne.s32.totalorder %s78, %s79
    %p88 = scmp.eq.s32.totalorder %s21, 0
    %p89 = por %p87, %p88
    %p90 = scmp.ne.s32.totalorder %s78, %s79
    %p91 = scmp.eq.s32.totalorder %s22, 3
    %p92 = por %p90, %p91
    %p94 = scmp.ne.s32.totalorder %s79, %s93
    %p95 = scmp.eq.s32.totalorder %s22, 0
    %p96 = por %p94, %p95
    %s98 = sadd.s32 %s97, 1
    %p101 = scmp.eq.s32.totalorder %s16, 3
    %p102 = scmp.ne.s32.totalorder %s97, %s99
    %p103 = scmp.eq.s32.totalorder %s16, 0
    %p104 = por %p102, %p103
    %p105 = scmp.ne.s32.totalorder %s97, %s99
    %p106 = scmp.eq.s32.totalorder %s21, 3
    %p107 = por %p105, %p106
    %p108 = scmp.ne.s32.totalorder %s99, %s100
    %p109 = scmp.eq.s32.totalorder %s21, 0
    %p110 = por %p108, %p109
    %p111 = scmp.ne.s32.totalorder %s99, %s100
    %p112 = scmp.eq.s32.totalorder %s22, 3
    %p113 = por %p111, %p112
    %p115 = scmp.ne.s32.totalorder %s100, %s114
    %p116 = scmp.eq.s32.totalorder %s22, 0
    %p117 = por %p115, %p116
    %s119 = sadd.s32 %s118, 1
    %p122 = scmp.eq.s32.totalorder %s16, 3
    %p123 = scmp.ne.s32.totalorder %s118, %s120
    %p124 = scmp.eq.s32.totalorder %s16, 0
    %p125 = por %p123, %p124
    %p126 = scmp.ne.s32.totalorder %s118, %s120
    %p127 = scmp.eq.s32.totalorder %s21, 3
    %p128 = por %p126, %p127
    %p129 = scmp.ne.s32.totalorder %s120, %s121
    %p130 = scmp.eq.s32.totalorder %s21, 0
    %p131 = por %p129, %p130
    %p132 = scmp.ne.s32.totalorder %s120, %s121
    %p133 = scmp.eq.s32.totalorder %s22, 3
    %p134 = por %p132, %p133
    %p136 = scmp.ne.s32.totalorder %s121, %s135
    %p137 = scmp.eq.s32.totalorder %s22, 0
    %p138 = por %p136, %p137
    %s140 = sadd.s32 %s139, 1
    %p143 = scmp.eq.s32.totalorder %s16, 3
    %p144 = scmp.ne.s32.totalorder %s139, %s141
    %p145 = scmp.eq.s32.totalorder %s16, 0
    %p146 = por %p144, %p145
    %p147 = scmp.ne.s32.totalorder %s139, %s141
    %p148 = scmp.eq.s32.totalorder %s21, 3
    %p149 = por %p147, %p148
    %p150 = scmp.ne.s32.totalorder %s141, %s142
    %p151 = scmp.eq.s32.totalorder %s21, 0
    %p152 = por %p150, %p151
    %p153 = scmp.ne.s32.totalorder %s141, %s142
    %p154 = scmp.eq.s32.totalorder %s22, 3
    %p155 = por %p153, %p154
    %p157 = scmp.ne.s32.totalorder %s142, %s156
    %p158 = scmp.eq.s32.totalorder %s22, 0
    %p159 = por %p157, %p158
    %s161 = sadd.s32 %s160, 1
    %p164 = scmp.eq.s32.totalorder %s16, 3
    %p165 = scmp.ne.s32.totalorder %s160, %s162
    %p166 = scmp.eq.s32.totalorder %s16, 0
    %p167 = por %p165, %p166
    %p168 = scmp.ne.s32.totalorder %s160, %s162
    %p169 = scmp.eq.s32.totalorder %s21, 3
    %p170 = por %p168, %p169
    %p171 = scmp.ne.s32.totalorder %s162, %s163
    %p172 = scmp.eq.s32.totalorder %s21, 0
    %p173 = por %p171, %p172
    %p174 = scmp.ne.s32.totalorder %s162, %s163
    %p175 = scmp.eq.s32.totalorder %s22, 3
    %p176 = por %p174, %p175
    %p178 = scmp.ne.s32.totalorder %s163, %s177
    %p179 = scmp.eq.s32.totalorder %s22, 0
    %p180 = por %p178, %p179
    %s182 = sadd.s32 %s181, 1
    %p185 = scmp.eq.s32.totalorder %s16, 3
    %p186 = scmp.ne.s32.totalorder %s181, %s183
    %p187 = scmp.eq.s32.totalorder %s16, 0
    %p188 = por %p186, %p187
    %p189 = scmp.ne.s32.totalorder %s181, %s183
    %p190 = scmp.eq.s32.totalorder %s21, 3
    %p191 = por %p189, %p190
    %p192 = scmp.ne.s32.totalorder %s183, %s184
    %p193 = scmp.eq.s32.totalorder %s21, 0
    %p194 = por %p192, %p193
    %p195 = scmp.ne.s32.totalorder %s183, %s184
    %p196 = scmp.eq.s32.totalorder %s22, 3
    %p197 = por %p195, %p196
    %p199 = scmp.ne.s32.totalorder %s184, %s198
    %p200 = scmp.eq.s32.totalorder %s22, 0
    %p201 = por %p199, %p200
    %s203 = sadd.s32 %s202, 1
    %p206 = scmp.eq.s32.totalorder %s16, 3
    %p207 = scmp.ne.s32.totalorder %s202, %s204
    %p208 = scmp.eq.s32.totalorder %s16, 0
    %p209 = por %p207, %p208
    %p210 = scmp.ne.s32.totalorder %s202, %s204
    %p211 = scmp.eq.s32.totalorder %s21, 3
    %p212 = por %p210, %p211
    %p213 = scmp.ne.s32.totalorder %s204, %s205
    %p214 = scmp.eq.s32.totalorder %s21, 0
    %p215 = por %p213, %p214
    %p216 = scmp.ne.s32.totalorder %s204, %s205
    %p217 = scmp.eq.s32.totalorder %s22, 3
    %p218 = por %p216, %p217
    %p220 = scmp.ne.s32.totalorder %s205, %s219
    %p221 = scmp.eq.s32.totalorder %s22, 0
    %p222 = por %p220, %p221
    %s223 = ssub.s32 %s16, %s23
    %p224 = scmp.eq.s32.totalorder %s223, 0
    %s226 = sadd.s32 %s225, 1
    %s227 = scalar_select %p224, %s225, %s226
    %p230 = pneg %p224
    %p231 = scmp.eq.s32.totalorder %s16, 3
    %p232 = por %p230, %p231
    %p233 = scmp.ne.s32.totalorder %s225, %s228
    %p234 = scmp.eq.s32.totalorder %s16, 0
    %p235 = por %p233, %p234
    %p236 = scmp.ne.s32.totalorder %s225, %s228
    %p237 = scmp.eq.s32.totalorder %s21, 3
    %p238 = por %p236, %p237
    %p239 = scmp.ne.s32.totalorder %s228, %s229
    %p240 = scmp.eq.s32.totalorder %s21, 0
    %p241 = por %p239, %p240
    %p242 = scmp.ne.s32.totalorder %s228, %s229
    %p243 = scmp.eq.s32.totalorder %s22, 3
    %p244 = por %p242, %p243
    %p246 = scmp.ne.s32.totalorder %s229, %s245
    %p247 = scmp.eq.s32.totalorder %s22, 0
    %p248 = por %p246, %p247
    %p249 = scmp.le.s32.totalorder 1, %s16
    %p250 = scmp.lt.s32.totalorder %s16, 5
    %p251 = pnand %p249, %p250
    %p252 = pneg %p251
    // Predicated region
    $region9: #{tpu_custom_call.1} parent=5 // pred_check
      _
    $region10: #{tpu_custom_call.1} parent=5 // pred_check_branch
      %254 = sbr.rel (%p251) target = $region12
    $region11: #{tpu_custom_call.1} parent=5 // pred_region
      %s255 = ssub.s32 %s16, 1
      // Predicated region
      $region13: #{tpu_custom_call.1} parent=11 // pred_check
        %p256 = pneg %p89
      $region14: #{tpu_custom_call.1} parent=11 // pred_check_branch
        %258 = sbr.rel (%p256) target = $region16
      $region15: #{tpu_custom_call.1} parent=11 // pred_region
        _
      $region16: #{tpu_custom_call.1} parent=11 // pred_fallthru
        _
      // Predicated region
      $region17: #{tpu_custom_call.1} parent=11 // pred_check
        %p259 = pneg %p110
      $region18: #{tpu_custom_call.1} parent=11 // pred_check_branch
        %261 = sbr.rel (%p259) target = $region20
      $region19: #{tpu_custom_call.1} parent=11 // pred_region
        _
      $region20: #{tpu_custom_call.1} parent=11 // pred_fallthru
        _
      // Predicated region
      $region21: #{tpu_custom_call.1} parent=11 // pred_check
        %p262 = pneg %p131
      $region22: #{tpu_custom_call.1} parent=11 // pred_check_branch
        %264 = sbr.rel (%p262) target = $region24
      $region23: #{tpu_custom_call.1} parent=11 // pred_region
        _
      $region24: #{tpu_custom_call.1} parent=11 // pred_fallthru
        _
      // Predicated region
      $region25: #{tpu_custom_call.1} parent=11 // pred_check
        %p265 = pneg %p152
      $region26: #{tpu_custom_call.1} parent=11 // pred_check_branch
        %267 = sbr.rel (%p265) target = $region28
      $region27: #{tpu_custom_call.1} parent=11 // pred_region
        _
      $region28: #{tpu_custom_call.1} parent=11 // pred_fallthru
        _
      // Predicated region
      $region29: #{tpu_custom_call.1} parent=11 // pred_check
        %p268 = pneg %p173
      $region30: #{tpu_custom_call.1} parent=11 // pred_check_branch
        %270 = sbr.rel (%p268) target = $region32
      $region31: #{tpu_custom_call.1} parent=11 // pred_region
        _
      $region32: #{tpu_custom_call.1} parent=11 // pred_fallthru
        _
      // Predicated region
      $region33: #{tpu_custom_call.1} parent=11 // pred_check
        %p271 = pneg %p194
      $region34: #{tpu_custom_call.1} parent=11 // pred_check_branch
        %273 = sbr.rel (%p271) target = $region36
      $region35: #{tpu_custom_call.1} parent=11 // pred_region
        _
      $region36: #{tpu_custom_call.1} parent=11 // pred_fallthru
        _
      // Predicated region
      $region37: #{tpu_custom_call.1} parent=11 // pred_check
        %p274 = pneg %p215
      $region38: #{tpu_custom_call.1} parent=11 // pred_check_branch
        %276 = sbr.rel (%p274) target = $region40
      $region39: #{tpu_custom_call.1} parent=11 // pred_region
        _
      $region40: #{tpu_custom_call.1} parent=11 // pred_fallthru
        _
    $region12: #{tpu_custom_call.1} parent=5 // pred_fallthru
      _
    %p277 = scmp.lt.s32.totalorder %s16, 4
    // Predicated region
    $region41: #{tpu_custom_call.1} parent=5 // pred_check
      %p278 = pneg %p277
    $region42: #{tpu_custom_call.1} parent=5 // pred_check_branch
      %280 = sbr.rel (%p278) target = $region44
    $region43: #{tpu_custom_call.1} parent=5 // pred_region
      // Predicated region
      $region45: #{tpu_custom_call.1} parent=43 // pred_check
        %p281 = pneg %p36
      $region46: #{tpu_custom_call.1} parent=43 // pred_check_branch
        %283 = sbr.rel (%p281) target = $region48
      $region47: #{tpu_custom_call.1} parent=43 // pred_region
        %s284 = smul.u32 2, %s16
        %p285 = scmp.lt.s32.totalorder %s284, 7
        %s286 = scalar_select %p285, %s284, 7
        %s287 = smul.addr %s286, 8
        %s288 = scalar_lea.vmem %s0, %s287
        %s289 = smul.u32 2, %s16
      $region48: #{tpu_custom_call.1} parent=43 // pred_fallthru
        _
      // Predicated region
      $region49: #{tpu_custom_call.1} parent=43 // pred_check
        %p290 = pneg %p62
      $region50: #{tpu_custom_call.1} parent=43 // pred_check_branch
        %292 = sbr.rel (%p290) target = $region52
      $region51: #{tpu_custom_call.1} parent=43 // pred_region
        %s293 = smul.u32 2, %s16
        %p294 = scmp.lt.s32.totalorder %s293, 7
        %s295 = scalar_select %p294, %s293, 7
        %s296 = smul.addr %s295, 8
        %s297 = scalar_lea.vmem %s1, %s296
        %s298 = smul.u32 2, %s16
      $region52: #{tpu_custom_call.1} parent=43 // pred_fallthru
        _
    $region44: #{tpu_custom_call.1} parent=5 // pred_fallthru
      _
    %p299 = scmp.le.s32.totalorder 1, %s16
    %p300 = scmp.lt.s32.totalorder %s16, 5
    %p301 = pnand %p299, %p300
    %p302 = pneg %p301
    // Predicated region
    $region53: #{tpu_custom_call.1} parent=5 // pred_check
      _
    $region54: #{tpu_custom_call.1} parent=5 // pred_check_branch
      %304 = sbr.rel (%p301) target = $region56
    $region55: #{tpu_custom_call.1} parent=5 // pred_region
      %s305 = ssub.s32 %s16, 1
      %s306 = smul.u32 2, %s21
      %p307 = scmp.lt.s32.totalorder %s306, 7
      %s308 = scalar_select %p307, %s306, 7
      %s309 = smul.addr %s308, 8
      %s310 = scalar_lea.vmem %s0, %s309
      %p311 = pneg %p42
      %p312 = pneg %p39
      %s313 = smul.u32 2, %s21
      %p314 = scmp.lt.s32.totalorder %s313, 7
      %s315 = scalar_select %p314, %s313, 7
      %s316 = smul.addr %s315, 8
      %s317 = scalar_lea.vmem %s1, %s316
      %p318 = pneg %p68
      %p319 = pneg %p65
      %p320 = pneg %p89
      %p321 = pneg %p86
      %p322 = pneg %p110
      %p323 = pneg %p107
      %p324 = pneg %p131
      %p325 = pneg %p128
      %p326 = pneg %p152
      %p327 = pneg %p149
      %p328 = pneg %p173
      %p329 = pneg %p170
      %p330 = pneg %p194
      %p331 = pneg %p191
      %p332 = pneg %p215
      %p333 = pneg %p212
      %p334 = pneg %p241
      %p335 = pneg %p238
      %s336 = smul.u32 2, %s21
      %p337 = scmp.lt.s32.totalorder %s336, 7
      %s338 = scalar_select %p337, %s336, 7
      %s339 = smul.addr %s338, 8
      %s340 = scalar_lea.vmem %s9, %s339
      %s341 = smul.u32 2, %s21
      %p342 = scmp.lt.s32.totalorder %s341, 7
      %s343 = scalar_select %p342, %s341, 7
      %s344 = smul.addr %s343, 8
      %s345 = scalar_lea.vmem %s0, %s344
      %s346 = smul.u32 2, %s21
      %s347 = smul.u32 2, %s21
      %p348 = scmp.lt.s32.totalorder %s347, 7
      %s349 = scalar_select %p348, %s347, 7
      %s350 = smul.addr %s349, 8
      %s351 = scalar_lea.vmem %s1, %s350
      %s352 = smul.u32 2, %s21
      %s353 = smul.u32 2, %s21
      %p354 = scmp.lt.s32.totalorder %s353, 7
      %s355 = scalar_select %p354, %s353, 7
      %s356 = smul.addr %s355, 8
      %s357 = scalar_lea.vmem %s9, %s356
      %s358 = smul.u32 2, %s21
      %v359 = vld [vmem:[%s345] sm:$0xff]
      %v360 = vld [vmem:[%s345 + $0x8] sm:$0xff]
      %v361 = vld [vmem:[%s351] sm:$0xff]
      %v362 = vld [vmem:[%s351 + $0x8] sm:$0xff]
      %v363 = vld [vmem:[%s2] sm:$0xff]
      %v364 = vld [vmem:[%s2 + $0x8] sm:$0xff]
      %v365 = vld [vmem:[%s3] sm:$0xff]
      %vm366 = vcmask 64512
      %v368 = vsel %vm366, %v361, 0
      %v371 = vsel %vm366, %v362, 0
      %373 = vmatprep.subr.mxu0 0.0
      %374 = vmatpush1.msra.mxu0 %v365
      %375 = vmatprep.subr.mxu0 0.0
      %376 = vmatpush1.msra.mxu0 0.0
      %377 = vmatprep.subr.mxu0 0.0
      %378 = vmatpush1.msra.mxu0 0.0
      %379 = vmatprep.subr.mxu0 0.0
      %380 = vmatpush1.msra.mxu0 0.0
      %381 = vmatprep.subr.mxu0 0.0
      %382 = vmatpush1.msra.mxu0 0.0
      %383 = vmatprep.subr.mxu0 0.0
      %384 = vmatpush1.msra.mxu0 0.0
      %385 = vmatprep.subr.mxu0 0.0
      %386 = vmatpush1.msra.mxu0 0.0
      %387 = vmatprep.subr.mxu0 0.0
      %388 = vmatpush1.msra.mxu0 0.0
      %389 = vmatprep.subr.mxu0 0.0
      %390 = vmatpush1.msra.mxu0 0.0
      %391 = vmatprep.subr.mxu0 0.0
      %392 = vmatpush1.msra.mxu0 0.0
      %393 = vmatprep.subr.mxu0 0.0
      %394 = vmatpush1.msra.mxu0 0.0
      %395 = vmatprep.subr.mxu0 0.0
      %396 = vmatpush1.msra.mxu0 0.0
      %397 = vmatprep.subr.mxu0 0.0
      %398 = vmatpush1.msra.mxu0 0.0
      %399 = vmatprep.subr.mxu0 0.0
      %400 = vmatpush1.msra.mxu0 0.0
      %401 = vmatprep.subr.mxu0 0.0
      %402 = vmatpush1.msra.mxu0 0.0
      %403 = vmatprep.subr.mxu0 0.0
      %404 = vmatpush1.msra.mxu0 0.0
      %405 = vmatprep.subr.mxu0 0.0
      %406 = vmatpush1.msra.mxu0 0.0
      %407 = vmatprep.subr.mxu0 0.0
      %408 = vmatpush1.msra.mxu0 0.0
      %409 = vmatprep.subr.mxu0 0.0
      %410 = vmatpush1.msra.mxu0 0.0
      %411 = vmatprep.subr.mxu0 0.0
      %412 = vmatpush1.msra.mxu0 0.0
      %413 = vmatprep.subr.mxu0 0.0
      %414 = vmatpush1.msra.mxu0 0.0
      %415 = vmatprep.subr.mxu0 0.0
      %416 = vmatpush1.msra.mxu0 0.0
      %417 = vmatprep.subr.mxu0 0.0
      %418 = vmatpush1.msra.mxu0 0.0
      %419 = vmatprep.subr.mxu0 0.0
      %420 = vmatpush1.msra.mxu0 0.0
      %421 = vmatprep.subr.mxu0 0.0
      %422 = vmatpush1.msra.mxu0 0.0
      %423 = vmatprep.subr.mxu0 0.0
      %424 = vmatpush1.msra.mxu0 0.0
      %425 = vmatprep.subr.mxu0 0.0
      %426 = vmatpush1.msra.mxu0 0.0
      %427 = vmatprep.subr.mxu0 0.0
      %428 = vmatpush1.msra.mxu0 0.0
      %429 = vmatprep.subr.mxu0 0.0
      %430 = vmatpush1.msra.mxu0 0.0
      %431 = vmatprep.subr.mxu0 0.0
      %432 = vmatpush1.msra.mxu0 0.0
      %433 = vmatprep.subr.mxu0 0.0
      %434 = vmatpush1.msra.mxu0 0.0
      %435 = vmatprep.subr.mxu0 0.0
      %436 = vmatpush1.msra.mxu0 0.0
      %437 = vmatprep.mubr.f32.mxu0 0.0
      %438 = vmatmul.mubr.f32.gmra.mrb[0].mxu0 %v368
      %v439 = vpop.f32.mrb[0].mxu0
      %v440 = vadd.f32 0.0, %v439
      %v441 = vpop.f32.mrb[0].mxu0
      %442 = vmatprep.mubr.f32.mxu0 0.0
      %443 = vmatmul.mubr.f32.gmra.mrb[0].mxu0 %v371
      %v444 = vpop.f32.mrb[0].mxu0
      %v445 = vadd.f32 0.0, %v444
      %v446 = vpop.f32.mrb[0].mxu0
      %447 = vdwg.mxu0
      %vm448 = vcmask 130048
      %v450 = vsel %vm448, %v359, 0
      %v453 = vsel %vm448, %v360, 0
      %455 = vmatprep.subr.mxu0 0.0
      %456 = vmatpush1.msra.mxu0 %v363
      %457 = vmatprep.subr.mxu0 0.0
      %458 = vmatpush1.msra.mxu0 %v364
      %459 = vmatprep.subr.mxu0 0.0
      %460 = vmatpush1.msra.mxu0 0.0
      %461 = vmatprep.subr.mxu0 0.0
      %462 = vmatpush1.msra.mxu0 0.0
      %463 = vmatprep.subr.mxu0 0.0
      %464 = vmatpush1.msra.mxu0 0.0
      %465 = vmatprep.subr.mxu0 0.0
      %466 = vmatpush1.msra.mxu0 0.0
      %467 = vmatprep.subr.mxu0 0.0
      %468 = vmatpush1.msra.mxu0 0.0
      %469 = vmatprep.subr.mxu0 0.0
      %470 = vmatpush1.msra.mxu0 0.0
      %471 = vmatprep.subr.mxu0 0.0
      %472 = vmatpush1.msra.mxu0 0.0
      %473 = vmatprep.subr.mxu0 0.0
      %474 = vmatpush1.msra.mxu0 0.0
      %475 = vmatprep.subr.mxu0 0.0
      %476 = vmatpush1.msra.mxu0 0.0
      %477 = vmatprep.subr.mxu0 0.0
      %478 = vmatpush1.msra.mxu0 0.0
      %479 = vmatprep.subr.mxu0 0.0
      %480 = vmatpush1.msra.mxu0 0.0
      %481 = vmatprep.subr.mxu0 0.0
      %482 = vmatpush1.msra.mxu0 0.0
      %483 = vmatprep.subr.mxu0 0.0
      %484 = vmatpush1.msra.mxu0 0.0
      %485 = vmatprep.subr.mxu0 0.0
      %486 = vmatpush1.msra.mxu0 0.0
      %487 = vmatprep.subr.mxu0 0.0
      %488 = vmatpush1.msra.mxu0 0.0
      %489 = vmatprep.subr.mxu0 0.0
      %490 = vmatpush1.msra.mxu0 0.0
      %491 = vmatprep.subr.mxu0 0.0
      %492 = vmatpush1.msra.mxu0 0.0
      %493 = vmatprep.subr.mxu0 0.0
      %494 = vmatpush1.msra.mxu0 0.0
      %495 = vmatprep.subr.mxu0 0.0
      %496 = vmatpush1.msra.mxu0 0.0
      %497 = vmatprep.subr.mxu0 0.0
      %498 = vmatpush1.msra.mxu0 0.0
      %499 = vmatprep.subr.mxu0 0.0
      %500 = vmatpush1.msra.mxu0 0.0
      %501 = vmatprep.subr.mxu0 0.0
      %502 = vmatpush1.msra.mxu0 0.0
      %503 = vmatprep.subr.mxu0 0.0
      %504 = vmatpush1.msra.mxu0 0.0
      %505 = vmatprep.subr.mxu0 0.0
      %506 = vmatpush1.msra.mxu0 0.0
      %507 = vmatprep.subr.mxu0 0.0
      %508 = vmatpush1.msra.mxu0 0.0
      %509 = vmatprep.subr.mxu0 0.0
      %510 = vmatpush1.msra.mxu0 0.0
      %511 = vmatprep.subr.mxu0 0.0
      %512 = vmatpush1.msra.mxu0 0.0
      %513 = vmatprep.subr.mxu0 0.0
      %514 = vmatpush1.msra.mxu0 0.0
      %515 = vmatprep.subr.mxu0 0.0
      %516 = vmatpush1.msra.mxu0 0.0
      %517 = vmatprep.subr.mxu0 0.0
      %518 = vmatpush1.msra.mxu0 0.0
      %519 = vmatprep.mubr.f32.mxu0 0.0
      %520 = vmatmul.mubr.f32.gmra.mrb[0].mxu0 %v450
      %v521 = vpop.f32.mrb[0].mxu0
      %v522 = vadd.f32 %v440, %v521
      %v523 = vpop.f32.mrb[0].mxu0
      %524 = vmatprep.mubr.f32.mxu0 0.0
      %525 = vmatmul.mubr.f32.gmra.mrb[0].mxu0 %v453
      %v526 = vpop.f32.mrb[0].mxu0
      %v527 = vadd.f32 %v445, %v526
      %v528 = vpop.f32.mrb[0].mxu0
      %529 = vdwg.mxu0
      %v530 = vld [vmem:[%s4] sm:$0x1]
      %v532 = vlaneseq
      %v533 = vshrl.u32 %v532, 7
      %v534 = vsub.s32 0, %v533
      %v535 = vrot.slane %v530, %v534
      %v537 = vadd.f32 %v522, %v535
      %v538 = vadd.f32 %v527, %v535
      %v539 = vmax.f32 %v537, 0.0
      %v540 = vmax.f32 %v538, 0.0
      %v541 = vld [vmem:[%s5] sm:$0xff]
      %v542 = vld [vmem:[%s5 + $0x8] sm:$0xff]
      %v543 = vld [vmem:[%s5 + $0x10] sm:$0xff]
      %v544 = vld [vmem:[%s5 + $0x18] sm:$0xff]
      %v545 = vld [vmem:[%s6] sm:$0x1]
      %v547 = vlaneseq
      %v548 = vshrl.u32 %v547, 7
      %v549 = vsub.s32 0, %v548
      %v550 = vrot.slane %v545, %v549
      %vm552 = vcmask 261120
      %v554 = vsel %vm552, %v539, 0
      %v557 = vsel %vm552, %v540, 0
      %559 = vmatprep.subr.mxu0 0.0
      %560 = vmatpush1.msra.mxu0 %v541
      %561 = vmatprep.subr.mxu0 0.0
      %562 = vmatpush1.msra.mxu0 %v542
      %563 = vmatprep.subr.mxu0 0.0
      %564 = vmatpush1.msra.mxu0 %v543
      %565 = vmatprep.subr.mxu0 0.0
      %566 = vmatpush1.msra.mxu0 %v544
      %567 = vmatprep.subr.mxu0 0.0
      %568 = vmatpush1.msra.mxu0 0.0
      %569 = vmatprep.subr.mxu0 0.0
      %570 = vmatpush1.msra.mxu0 0.0
      %571 = vmatprep.subr.mxu0 0.0
      %572 = vmatpush1.msra.mxu0 0.0
      %573 = vmatprep.subr.mxu0 0.0
      %574 = vmatpush1.msra.mxu0 0.0
      %575 = vmatprep.subr.mxu0 0.0
      %576 = vmatpush1.msra.mxu0 0.0
      %577 = vmatprep.subr.mxu0 0.0
      %578 = vmatpush1.msra.mxu0 0.0
      %579 = vmatprep.subr.mxu0 0.0
      %580 = vmatpush1.msra.mxu0 0.0
      %581 = vmatprep.subr.mxu0 0.0
      %582 = vmatpush1.msra.mxu0 0.0
      %583 = vmatprep.subr.mxu0 0.0
      %584 = vmatpush1.msra.mxu0 0.0
      %585 = vmatprep.subr.mxu0 0.0
      %586 = vmatpush1.msra.mxu0 0.0
      %587 = vmatprep.subr.mxu0 0.0
      %588 = vmatpush1.msra.mxu0 0.0
      %589 = vmatprep.subr.mxu0 0.0
      %590 = vmatpush1.msra.mxu0 0.0
      %591 = vmatprep.subr.mxu0 0.0
      %592 = vmatpush1.msra.mxu0 0.0
      %593 = vmatprep.subr.mxu0 0.0
      %594 = vmatpush1.msra.mxu0 0.0
      %595 = vmatprep.subr.mxu0 0.0
      %596 = vmatpush1.msra.mxu0 0.0
      %597 = vmatprep.subr.mxu0 0.0
      %598 = vmatpush1.msra.mxu0 0.0
      %599 = vmatprep.subr.mxu0 0.0
      %600 = vmatpush1.msra.mxu0 0.0
      %601 = vmatprep.subr.mxu0 0.0
      %602 = vmatpush1.msra.mxu0 0.0
      %603 = vmatprep.subr.mxu0 0.0
      %604 = vmatpush1.msra.mxu0 0.0
      %605 = vmatprep.subr.mxu0 0.0
      %606 = vmatpush1.msra.mxu0 0.0
      %607 = vmatprep.subr.mxu0 0.0
      %608 = vmatpush1.msra.mxu0 0.0
      %609 = vmatprep.subr.mxu0 0.0
      %610 = vmatpush1.msra.mxu0 0.0
      %611 = vmatprep.subr.mxu0 0.0
      %612 = vmatpush1.msra.mxu0 0.0
      %613 = vmatprep.subr.mxu0 0.0
      %614 = vmatpush1.msra.mxu0 0.0
      %615 = vmatprep.subr.mxu0 0.0
      %616 = vmatpush1.msra.mxu0 0.0
      %617 = vmatprep.subr.mxu0 0.0
      %618 = vmatpush1.msra.mxu0 0.0
      %619 = vmatprep.subr.mxu0 0.0
      %620 = vmatpush1.msra.mxu0 0.0
      %621 = vmatprep.subr.mxu0 0.0
      %622 = vmatpush1.msra.mxu0 0.0
      %623 = vmatprep.mubr.f32.mxu0 0.0
      %624 = vmatmul.mubr.f32.gmra.mrb[0].mxu0 %v554
      %v625 = vpop.f32.mrb[0].mxu0
      %v626 = vadd.f32 %v550, %v625
      %v627 = vpop.f32.mrb[0].mxu0
      %628 = vmatprep.mubr.f32.mxu0 0.0
      %629 = vmatmul.mubr.f32.gmra.mrb[0].mxu0 %v557
      %v630 = vpop.f32.mrb[0].mxu0
      %v631 = vadd.f32 %v550, %v630
      %v632 = vpop.f32.mrb[0].mxu0
      %633 = vdwg.mxu0
      %v634 = vmax.f32 %v626, 0.0
      %v635 = vmax.f32 %v631, 0.0
      %v636 = vld [vmem:[%s7] sm:$0x1]
      %v638 = vlaneseq
      %v639 = vshrl.u32 %v638, 7
      %v640 = vsub.s32 0, %v639
      %v641 = vrot.slane %v636, %v640
      %v643 = vmul.f32 %v634, %v641
      %v644 = vmul.f32 %v635, %v641
      %v645 = vsel %vm552, %v643, 0.0
      %646 = vadd.xlane.f32.xlu0 %v645
      %v647 = vpop.xlane.xlu0 %646
      %v648 = vsel %vm552, %v644, 0.0
      %649 = vadd.xlane.f32.xlu0 %v648
      %v650 = vpop.xlane.xlu0 %649
      %s651 = sld [smem:[#allocation2]]
      %v652 = vstv %s651
      %v653 = vadd.f32 %v647, %v652
      %v654 = vadd.f32 %v650, %v652
      %vm655 = vcmask 7168
      %656 = vst.msk [vmem:[%s357] sm:$0xff] %vm655, %v653
      %657 = vst.msk [vmem:[%s357 + $0x8] sm:$0xff] %vm655, %v654
      %s658 = smul.u32 2, %s21
      %p659 = scmp.lt.s32.totalorder %s658, 7
      %s660 = scalar_select %p659, %s658, 7
      %s661 = smul.addr %s660, 8
      %s662 = scalar_lea.vmem %s9, %s661
      // Predicated region
      $region57: #{tpu_custom_call.1} parent=55 // pred_check
        %p663 = pneg %p238
      $region58: #{tpu_custom_call.1} parent=55 // pred_check_branch
        %665 = sbr.rel (%p663) target = $region60
      $region59: #{tpu_custom_call.1} parent=55 // pred_region
        %s666 = smul.u32 2, %s21
      $region60: #{tpu_custom_call.1} parent=55 // pred_fallthru
        _
    $region56: #{tpu_custom_call.1} parent=5 // pred_fallthru
      _
    %p667 = scmp.le.s32.totalorder 2, %s16
    // Predicated region
    $region61: #{tpu_custom_call.1} parent=5 // pred_check
      %p668 = pneg %p667
    $region62: #{tpu_custom_call.1} parent=5 // pred_check_branch
      %670 = sbr.rel (%p668) target = $region64
    $region63: #{tpu_custom_call.1} parent=5 // pred_region
      %s671 = ssub.s32 %s16, 2
      // Predicated region
      $region65: #{tpu_custom_call.1} parent=63 // pred_check
        %p672 = pneg %p244
      $region66: #{tpu_custom_call.1} parent=63 // pred_check_branch
        %674 = sbr.rel (%p672) target = $region68
      $region67: #{tpu_custom_call.1} parent=63 // pred_region
        %s675 = smul.u32 2, %s22
        %p676 = scmp.lt.s32.totalorder %s675, 7
        %s677 = scalar_select %p676, %s675, 7
        %s678 = smul.addr %s677, 8
        %s679 = scalar_lea.vmem %s9, %s678
      $region68: #{tpu_custom_call.1} parent=63 // pred_fallthru
        _
    $region64: #{tpu_custom_call.1} parent=5 // pred_fallthru
      _
  $region6: #{tpu_custom_call.1} parent=0 // loop_footer
    %s20 = sadd.s32 1, %s16
  $region7: #{tpu_custom_call.1} parent=0 // loop_footer_branch
    %15 = sbr.rel target = $region3
  $region8: #{tpu_custom_call.1} parent=0 // loop_exit
    _

</llo_original>
